<compile_context>
chip_gen: v7x
topology: tpu7x:2x2x1
jax: 0.10.0
libtpu: 0.0.40
codegen_flags: <defaults>
</compile_context>

<pallas_src>
import functools

import numpy as np

import jax
import jax.numpy as jnp
from jax import lax
from jax.experimental import pallas as pl
from jax.experimental.pallas import tpu as pltpu

_NPAD = 128  # lane-dense padded column count of the fused pooling matrix


def _round_up(x, m):
    return -(-x // m) * m


def _physical_vmem_bytes():
    """Per-core VMEM capacity; conservative fallback if the query fails."""
    try:
        info = pltpu.get_tpu_info()
        v = int(getattr(info, "vmem_capacity_bytes", 0))
        if v > 0:
            return v
    except Exception:
        pass
    return 64 * 1024 * 1024  # v7x per-TensorCore VMEM (safe everywhere)


def _choose_tm(bc, hw, in_itemsize, p_bytes, tile_budget):
    """Rows per grid step, sized against the per-core VMEM budget.

    Per-step accounting: 4 inputs x 2 pipeline buffers (native dtype) plus
    ~5 tile-sized f32 Mosaic temporaries (f4, d, d*d, accumulator, bf16 copy),
    plus the resident pool matrix (counted double-buffered, conservatively).
    """
    budget = tile_budget - p_bytes
    bytes_per_row = 8 * hw * in_itemsize + 20 * hw
    cap = max(8, (budget // bytes_per_row) // 8 * 8)
    # Keep >= 2 grid steps whenever B*C allows so the "parallel" axis can span
    # both v7x TensorCores (and the pipeline has something to overlap).
    tm_half = _round_up(pl.cdiv(bc, 2), 8)
    return int(max(8, min(cap, tm_half)))


def _build_pool_matrix(B, C, H, W, levels, tot):
    """(H*W, 128) matrix P with pre-scaled adaptive-avg-pool weights so that
    sum((d @ P)**2) == sum_l cnt_l * mean(pool_l(d)**2) / (tot * 3)."""
    P = np.zeros((H * W, _NPAD), dtype=np.float32)
    col = 0
    cnt = 1.0
    for l in levels:
        cnt /= 2.0
        kh, kw = H // l, W // l
        w = (1.0 / (kh * kw)) * np.sqrt(cnt / (B * C * l * l * tot * 3.0))
        for ph in range(l):
            for pw in range(l):
                for hh in range(ph * kh, (ph + 1) * kh):
                    row0 = hh * W + pw * kw
                    P[row0:row0 + kw, col] = w
                col += 1
    return P


def _kd_kernel(*refs, c_full, has_pool, valid_rows, tile_rows):
    if has_pool:
        pool_ref, f4_ref, f3_ref, f2_ref, f1_ref, out_ref = refs
    else:
        f4_ref, f3_ref, f2_ref, f1_ref, out_ref = refs
        pool_ref = None

    f4 = f4_ref[...].astype(jnp.float32)          # upcast in-kernel (native-dtype DMA)

    row_ok = None
    if valid_rows is not None:                    # only the ragged last tile needs masking
        row0 = pl.program_id(0) * tile_rows
        rows = row0 + lax.broadcasted_iota(jnp.int32, (tile_rows, 1), 0)
        row_ok = rows < valid_rows

    pool = pool_ref[...] if has_pool else None    # bf16, resident (constant index_map)

    full_acc = None                               # sum over teachers of d*d   (TM, HW) f32
    pool_acc = None                               # sum over teachers of p*p   (TM, 128) f32
    for ft_ref in (f3_ref, f2_ref, f1_ref):
        d = f4 - ft_ref[...].astype(jnp.float32)  # pooling is linear: pool(fs)-pool(ft)=pool(d)
        if row_ok is not None:
            d = jnp.where(row_ok, d, 0.0)         # zero padded rows (contribute 0 everywhere)
        sq = d * d
        full_acc = sq if full_acc is None else full_acc + sq
        if has_pool:
            # bf16 MXU matmul (f32 accumulate) keeps the kernel HBM-bound on v7x/v5e.
            p = jnp.dot(d.astype(jnp.bfloat16), pool,
                        preferred_element_type=jnp.float32)
            pp = p * p
            pool_acc = pp if pool_acc is None else pool_acc + pp

    # One cross-lane reduce per tile for the full-res term; spread the scalar
    # evenly over the (8,128) output slab (exact power-of-two scaling).
    full_term = jnp.sum(full_acc) * jnp.float32(c_full / (8.0 * _NPAD))
    out_tile = jnp.zeros((1, 8, _NPAD), jnp.float32) + full_term
    if has_pool:
        # Pooled term only needs a sublane reduce; keep it lane-dense.
        lane = jnp.sum(pool_acc, axis=0, keepdims=True) * jnp.float32(0.125)
        out_tile = out_tile + lane[None, :, :]
    out_ref[...] = out_tile


def self_kd_loss1(F4, F3, F2, F1):
    B, C, H, W = F4.shape
    BC, HW = B * C, H * W

    levels = [l for l in (4, 2, 1) if l < H]
    for l in levels:
        # TODO(synk): non-divisible adaptive_avg_pool2d windows (H%l!=0 or W%l!=0) not supported.
        assert H % l == 0 and W % l == 0, "kernel assumes uniform adaptive pooling"
    has_pool = bool(levels)

    tot, cnt = 1.0, 1.0
    for _ in levels:
        cnt /= 2.0
        tot += cnt
    c_full = 1.0 / (BC * HW * tot * 3.0)

    # Generation-aware VMEM budgeting.
    phys = _physical_vmem_bytes()
    vmem_limit = int(min(phys * 0.7, 100 * 1024 * 1024))
    tile_budget = vmem_limit - (6 << 20)                  # headroom for outputs / Mosaic scratch
    p_bytes = (2 * HW * _NPAD * 2) if has_pool else 0     # bf16 pool matrix, double-buffered
    itemsize = max(jnp.dtype(x.dtype).itemsize for x in (F4, F3, F2, F1))
    TM = _choose_tm(BC, HW, itemsize, p_bytes, tile_budget)
    num_tiles = pl.cdiv(BC, TM)
    valid_rows = BC if (BC % TM) != 0 else None           # mask only when the last tile is ragged

    def flat(x):
        return x.reshape(BC, HW)                          # metadata reshape only: no pad / astype copies

    kernel = functools.partial(_kd_kernel, c_full=c_full, has_pool=has_pool,
                               valid_rows=valid_rows, tile_rows=TM)

    tile_spec = pl.BlockSpec((TM, HW), lambda i: (i, 0))
    in_specs = [tile_spec, tile_spec, tile_spec, tile_spec]
    args = [flat(F4), flat(F3), flat(F2), flat(F1)]
    if has_pool:
        P = jnp.asarray(_build_pool_matrix(B, C, H, W, levels, tot), dtype=jnp.bfloat16)
        in_specs = [pl.BlockSpec((HW, _NPAD), lambda i: (0, 0))] + in_specs
        args = [P] + args

    partials = pl.pallas_call(
        kernel,
        out_shape=jax.ShapeDtypeStruct((num_tiles, 8, _NPAD), jnp.float32),
        grid_spec=pltpu.PrefetchScalarGridSpec(
            num_scalar_prefetch=0,
            grid=(num_tiles,),
            in_specs=in_specs,
            out_specs=pl.BlockSpec((1, 8, _NPAD), lambda i: (i, 0, 0)),
        ),
        compiler_params=pltpu.CompilerParams(
            dimension_semantics=("parallel",),            # lets v7x shard tiles across both TCs
            vmem_limit_bytes=vmem_limit,
        ),
    )(*args)

    return jnp.sum(partials)


# ----------------------------- pure-JAX reference -----------------------------
def _ref_hcl(fs, ft):
    B, C, H, W = fs.shape
    loss = jnp.mean((fs - ft) ** 2)
    cnt, tot = 1.0, 1.0
    for l in (4, 2, 1):
        if l >= H:
            continue
        kh, kw = H // l, W // l
        ps = fs.reshape(B, C, l, kh, l, kw).mean(axis=(3, 5))
        pt = ft.reshape(B, C, l, kh, l, kw).mean(axis=(3, 5))
        cnt /= 2.0
        loss = loss + jnp.mean((ps - pt) ** 2) * cnt
        tot += cnt
    return loss / tot


def _ref_self_kd_loss1(F4, F3, F2, F1):
    F4, F3, F2, F1 = (x.astype(jnp.float32) for x in (F4, F3, F2, F1))
    return (_ref_hcl(F4, F3) + _ref_hcl(F4, F2) + _ref_hcl(F4, F1)) / 3.0


def _check(out, ref):
    assert jnp.allclose(out, ref, rtol=2e-3, atol=1e-3), (out, ref)


if __name__ == "__main__":
    key = jax.random.PRNGKey(0)

    # Case 1: canonical small shape.
    B, C, H, W = 2, 4, 16, 16
    k4, k3, k2, k1 = jax.random.split(key, 4)
    F4 = jax.random.normal(k4, (B, C, H, W), dtype=jnp.float32)
    F3 = jax.random.normal(k3, (B, C, H, W), dtype=jnp.float32)
    F2 = jax.random.normal(k2, (B, C, H, W), dtype=jnp.float32)
    F1 = jax.random.normal(k1, (B, C, H, W), dtype=jnp.float32)
    out = jax.block_until_ready(self_kd_loss1(F4, F3, F2, F1))
    _check(out, jax.block_until_ready(_ref_self_kd_loss1(F4, F3, F2, F1)))

    # Case 2: B*C not a multiple of 8 (exercises in-kernel row masking), small spatial.
    B2, C2, H2, W2 = 2, 3, 8, 8
    k4b, k3b, k2b, k1b = jax.random.split(jax.random.PRNGKey(1), 4)
    G = [jax.random.normal(k, (B2, C2, H2, W2), dtype=jnp.float32) for k in (k4b, k3b, k2b, k1b)]
    out2 = jax.block_until_ready(self_kd_loss1(*G))
    _check(out2, jax.block_until_ready(_ref_self_kd_loss1(*G)))

    # Case 3: B*C = 60 -> 2 grid tiles (TM=32) with a ragged, masked last tile.
    B3, C3, H3, W3 = 4, 15, 16, 16
    k4c, k3c, k2c, k1c = jax.random.split(jax.random.PRNGKey(2), 4)
    Q = [jax.random.normal(k, (B3, C3, H3, W3), dtype=jnp.float32) for k in (k4c, k3c, k2c, k1c)]
    out3 = jax.block_until_ready(self_kd_loss1(*Q))
    _check(out3, jax.block_until_ready(_ref_self_kd_loss1(*Q)))

    # Case 4: bf16 inputs (exercises native-dtype DMA + in-kernel upcast).
    Hb = [x.astype(jnp.bfloat16) for x in (F4, F3, F2, F1)]
    out4 = jax.block_until_ready(self_kd_loss1(*Hb))
    _check(out4, jax.block_until_ready(_ref_self_kd_loss1(*Hb)))

    print("KERNEL_OK")
</pallas_src>

<mosaic_0001>
module attributes {stable_mosaic.version = 11 : i64} {
  func.func @_kd_kernel(%arg0: i32, %arg1: memref<256x128xbf16, #tpu.memory_space<vmem>>, %arg2: memref<8x256xf32, #tpu.memory_space<vmem>>, %arg3: memref<8x256xf32, #tpu.memory_space<vmem>>, %arg4: memref<8x256xf32, #tpu.memory_space<vmem>>, %arg5: memref<8x256xf32, #tpu.memory_space<vmem>>, %arg6: memref<1x8x128xf32, #tpu.memory_space<vmem>>) attributes {dimension_semantics = [#tpu.dimension_semantics<parallel>], iteration_bounds = array<i64: 1>, scalar_prefetch = 0 : i64, scratch_operands = 0 : i64, tpu.core_type = #tpu.core_type<tc>, window_params = [{pipeline_mode = #tpu.pipeline_mode<synchronous>, transform_indices = @transform_0, window_bounds = array<i64: 256, 128>}, {transform_indices = @transform_1, window_bounds = array<i64: 8, 256>}, {transform_indices = @transform_2, window_bounds = array<i64: 8, 256>}, {transform_indices = @transform_3, window_bounds = array<i64: 8, 256>}, {transform_indices = @transform_4, window_bounds = array<i64: 8, 256>}, {transform_indices = @transform_5, window_bounds = array<i64: 1, 8, 128>}]} {
    %c0 = arith.constant 0 : index
    %c0_0 = arith.constant 0 : index
    %0 = vector.load %arg2[%c0, %c0_0] : memref<8x256xf32, #tpu.memory_space<vmem>>, vector<8x256xf32>
    %c0_1 = arith.constant 0 : index
    %c0_2 = arith.constant 0 : index
    %1 = vector.load %arg1[%c0_1, %c0_2] : memref<256x128xbf16, #tpu.memory_space<vmem>>, vector<256x128xbf16>
    %c0_3 = arith.constant 0 : index
    %c0_4 = arith.constant 0 : index
    %2 = vector.load %arg3[%c0_3, %c0_4] : memref<8x256xf32, #tpu.memory_space<vmem>>, vector<8x256xf32>
    %3 = arith.subf %0, %2 : vector<8x256xf32>
    %4 = arith.mulf %3, %3 : vector<8x256xf32>
    %5 = arith.truncf %3 : vector<8x256xf32> to vector<8x256xbf16>
    %cst = arith.constant dense<0.000000e+00> : vector<8x128xf32>
    %6 = tpu.matmul %5, %1, %cst {dimension_numbers = #tpu.dot_dimension_numbers<[1], [0], [0], [1], [0, 0, 1, 1], [], []>} : vector<8x256xbf16>, vector<256x128xbf16>, vector<8x128xf32> -> vector<8x128xf32>
    %7 = arith.mulf %6, %6 : vector<8x128xf32>
    %c0_5 = arith.constant 0 : index
    %c0_6 = arith.constant 0 : index
    %8 = vector.load %arg4[%c0_5, %c0_6] : memref<8x256xf32, #tpu.memory_space<vmem>>, vector<8x256xf32>
    %9 = arith.subf %0, %8 : vector<8x256xf32>
    %10 = arith.mulf %9, %9 : vector<8x256xf32>
    %11 = arith.addf %4, %10 : vector<8x256xf32>
    %12 = arith.truncf %9 : vector<8x256xf32> to vector<8x256xbf16>
    %cst_7 = arith.constant dense<0.000000e+00> : vector<8x128xf32>
    %13 = tpu.matmul %12, %1, %cst_7 {dimension_numbers = #tpu.dot_dimension_numbers<[1], [0], [0], [1], [0, 0, 1, 1], [], []>} : vector<8x256xbf16>, vector<256x128xbf16>, vector<8x128xf32> -> vector<8x128xf32>
    %14 = arith.mulf %13, %13 : vector<8x128xf32>
    %15 = arith.addf %7, %14 : vector<8x128xf32>
    %c0_8 = arith.constant 0 : index
    %c0_9 = arith.constant 0 : index
    %16 = vector.load %arg5[%c0_8, %c0_9] : memref<8x256xf32, #tpu.memory_space<vmem>>, vector<8x256xf32>
    %17 = arith.subf %0, %16 : vector<8x256xf32>
    %18 = arith.mulf %17, %17 : vector<8x256xf32>
    %19 = arith.addf %11, %18 : vector<8x256xf32>
    %20 = arith.truncf %17 : vector<8x256xf32> to vector<8x256xbf16>
    %cst_10 = arith.constant dense<0.000000e+00> : vector<8x128xf32>
    %21 = tpu.matmul %20, %1, %cst_10 {dimension_numbers = #tpu.dot_dimension_numbers<[1], [0], [0], [1], [0, 0, 1, 1], [], []>} : vector<8x256xbf16>, vector<256x128xbf16>, vector<8x128xf32> -> vector<8x128xf32>
    %22 = arith.mulf %21, %21 : vector<8x128xf32>
    %23 = arith.addf %15, %22 : vector<8x128xf32>
    %24 = vector.shape_cast %19 : vector<8x256xf32> to vector<1x8x256xf32>
    %cst_11 = arith.constant dense<0.000000e+00> : vector<1xf32>
    %25 = vector.multi_reduction <add>, %24, %cst_11 [1, 2] : vector<1x8x256xf32> to vector<1xf32>
    %26 = vector.shape_cast %25 : vector<1xf32> to vector<1x1x1xf32>
    %27 = vector.extract %26[0, 0, 0] : f32 from vector<1x1x1xf32>
    %cst_12 = arith.constant 8.47710523E-8 : f32
    %28 = arith.mulf %27, %cst_12 : f32
    %cst_13 = arith.constant 0.000000e+00 : f32
    %29 = vector.broadcast %cst_13 : f32 to vector<1x8x128xf32>
    %30 = vector.broadcast %28 : f32 to vector<1x8x128xf32>
    %31 = arith.addf %29, %30 : vector<1x8x128xf32>
    %cst_14 = arith.constant dense<0.000000e+00> : vector<128xf32>
    %32 = vector.multi_reduction <add>, %23, %cst_14 [0] : vector<8x128xf32> to vector<128xf32>
    %33 = vector.shape_cast %32 : vector<128xf32> to vector<1x128xf32>
    %cst_15 = arith.constant 1.250000e-01 : f32
    %34 = vector.broadcast %cst_15 : f32 to vector<1x128xf32>
    %35 = arith.mulf %33, %34 : vector<1x128xf32>
    %36 = vector.shape_cast %35 : vector<1x128xf32> to vector<1x1x128xf32>
    %37 = vector.broadcast %36 : vector<1x1x128xf32> to vector<1x8x128xf32>
    %38 = arith.addf %31, %37 : vector<1x8x128xf32>
    %c0_16 = arith.constant 0 : index
    %c0_17 = arith.constant 0 : index
    %c0_18 = arith.constant 0 : index
    %39 = vector.load %arg6[%c0_16, %c0_17, %c0_18] : memref<1x8x128xf32, #tpu.memory_space<vmem>>, vector<1x8x128xf32>
    tpu.vector_store %arg6[%c0_16, %c0_17, %c0_18], %38 {strides = array<i32>} : memref<1x8x128xf32, #tpu.memory_space<vmem>>, vector<1x8x128xf32>,
    return
  }
  func.func @transform_0(%arg0: i32) -> (i32, i32) {
    %c0_i32 = arith.constant 0 : i32
    %c0_i32_0 = arith.constant 0 : i32
    %c0_i32_1 = arith.constant 0 : i32
    return %c0_i32, %c0_i32_0 : i32, i32
  }
  func.func @transform_1(%arg0: i32) -> (i32, i32) {
    %c0_i32 = arith.constant 0 : i32
    %c0_i32_0 = arith.constant 0 : i32
    return %arg0, %c0_i32 : i32, i32
  }
  func.func @transform_2(%arg0: i32) -> (i32, i32) {
    %c0_i32 = arith.constant 0 : i32
    %c0_i32_0 = arith.constant 0 : i32
    return %arg0, %c0_i32 : i32, i32
  }
  func.func @transform_3(%arg0: i32) -> (i32, i32) {
    %c0_i32 = arith.constant 0 : i32
    %c0_i32_0 = arith.constant 0 : i32
    return %arg0, %c0_i32 : i32, i32
  }
  func.func @transform_4(%arg0: i32) -> (i32, i32) {
    %c0_i32 = arith.constant 0 : i32
    %c0_i32_0 = arith.constant 0 : i32
    return %arg0, %c0_i32 : i32, i32
  }
  func.func @transform_5(%arg0: i32) -> (i32, i32, i32) {
    %c0_i32 = arith.constant 0 : i32
    %c0_i32_0 = arith.constant 0 : i32
    %c0_i32_1 = arith.constant 0 : i32
    return %arg0, %c0_i32, %c0_i32_0 : i32, i32, i32
  }
}

</mosaic_0001>

<llo_original>
// kernel: tpu_custom_call.1
$region0: #{tpu_custom_call.1}
  #allocation0 [shape = 'u32[]', space=smem, size = 0x4, offset = 0x4, fixed_abs, tag = 'smem constant byte address 0x4 - core index']
  #allocation1 [shape = 'u32[144,128]{1,0:T(1,128)}', space=vmem, size = 0x12000, scoped, tag = 'internal scratch']
  %s0 = inlined_call_operand.hbm [shape: bf16[256,128], index: 0, kind: input, shape index: {}]
  %s1 = inlined_call_operand.hbm [shape: f32[8,256], index: 1, kind: input, shape index: {}]
  %s2 = inlined_call_operand.hbm [shape: f32[8,256], index: 2, kind: input, shape index: {}]
  %s3 = inlined_call_operand.hbm [shape: f32[8,256], index: 3, kind: input, shape index: {}]
  %s4 = inlined_call_operand.hbm [shape: f32[8,256], index: 4, kind: input, shape index: {}]
  %s5 = inlined_call_operand.hbm [shape: f32[1,8,128], index: 5, kind: output, shape index: {}]
  %s6 = sld [smem:[#allocation0]]
  $region50: #{tpu_custom_call.1} parent=0
    _
  %s8 = ssub.s32 1, %s6
  %s9 = scalar_select 0, %s8, %s6
  $region1: #{tpu_custom_call.1} parent=0
    #allocation2 [shape = 'u8[65536]{0}', space=vmem, size = 0x10000, scoped, tag = 'input window, operand 0, single buffered']
    #allocation3 [shape = 's32[1]{0}', space=sflag, size = 0x4, scoped, tag = 'scoped memory for tpu_custom_call.1']
    #allocation4 [shape = 's32[1]{0}', space=sflag, size = 0x4, scoped, tag = 'scoped memory for tpu_custom_call.1']
    #allocation5 [shape = 'u8[8192]{0}', space=vmem, size = 0x2000, scoped, tag = 'input window, operand 1, single buffered']
    #allocation6 [shape = 's32[1]{0}', space=sflag, size = 0x4, scoped, tag = 'scoped memory for tpu_custom_call.1']
    #allocation7 [shape = 'u8[8192]{0}', space=vmem, size = 0x2000, scoped, tag = 'input window, operand 2, single buffered']
    #allocation8 [shape = 'u8[8192]{0}', space=vmem, size = 0x2000, scoped, tag = 'input window, operand 3, single buffered']
    #allocation9 [shape = 's32[1]{0}', space=sflag, size = 0x4, scoped, tag = 'scoped memory for tpu_custom_call.1']
    #allocation10 [shape = 'u8[8192]{0}', space=vmem, size = 0x2000, scoped, tag = 'input window, operand 4, single buffered']
    #allocation11 [shape = 'u8[4096]{0}', space=vmem, size = 0x1000, scoped, tag = 'output window, operand 0, single buffered']
    %10 = vsyncpa [#allocation3], 0
    %11 = vsyncpa [#allocation6], 0
    %12 = vsyncpa [#allocation9], 0
    %13 = vsyncpa [#allocation4], 0
    // Predicated region
    $region2: #{tpu_custom_call.1} parent=1 // pred_check
      _
    $region3: #{tpu_custom_call.1} parent=1 // pred_check_branch
      %15 = sbr.rel (0) target = $region5
    $region4: #{tpu_custom_call.1} parent=1 // pred_region
      %s17 = ssub.s32 2048, 2048
      %18 = vsyncadd [#allocation3], %s17
      %s19 = sshll.u32 [#allocation2], 4
      %s20 = int_to_ptr.vmem [resolvable:$true] %s19
      %25 = dma.hbm_to_vmem [thread:$0]  %s0, 2048, %s20, [#allocation3], 64, 64, 4
    $region5: #{tpu_custom_call.1} parent=1 // pred_fallthru
      _
    // Predicated region
    $region6: #{tpu_custom_call.1} parent=1 // pred_check
      _
    $region7: #{tpu_custom_call.1} parent=1 // pred_check_branch
      %27 = sbr.rel (0) target = $region9
    $region8: #{tpu_custom_call.1} parent=1 // pred_region
      %s29 = ssub.s32 256, 256
      %30 = vsyncadd [#allocation6], %s29
      %s32 = sshll.u32 [#allocation5], 4
      %s33 = int_to_ptr.vmem [resolvable:$true] %s32
      %35 = dma.hbm_to_vmem [thread:$0]  %s1, 256, %s33, [#allocation6]
    $region9: #{tpu_custom_call.1} parent=1 // pred_fallthru
      _
    // Predicated region
    $region10: #{tpu_custom_call.1} parent=1 // pred_check
      _
    $region11: #{tpu_custom_call.1} parent=1 // pred_check_branch
      %37 = sbr.rel (0) target = $region13
    $region12: #{tpu_custom_call.1} parent=1 // pred_region
      %s39 = ssub.s32 256, 256
      %40 = vsyncadd [#allocation6], %s39
      %s42 = sshll.u32 [#allocation7], 4
      %s43 = int_to_ptr.vmem [resolvable:$true] %s42
      %45 = dma.hbm_to_vmem [thread:$0]  %s2, 256, %s43, [#allocation6]
    $region13: #{tpu_custom_call.1} parent=1 // pred_fallthru
      _
    // Predicated region
    $region14: #{tpu_custom_call.1} parent=1 // pred_check
      _
    $region15: #{tpu_custom_call.1} parent=1 // pred_check_branch
      %47 = sbr.rel (0) target = $region17
    $region16: #{tpu_custom_call.1} parent=1 // pred_region
      %s49 = ssub.s32 256, 256
      %50 = vsyncadd [#allocation9], %s49
      %s52 = sshll.u32 [#allocation8], 4
      %s53 = int_to_ptr.vmem [resolvable:$true] %s52
      %55 = dma.hbm_to_vmem [thread:$0]  %s3, 256, %s53, [#allocation9]
    $region17: #{tpu_custom_call.1} parent=1 // pred_fallthru
      _
    // Predicated region
    $region18: #{tpu_custom_call.1} parent=1 // pred_check
      _
    $region19: #{tpu_custom_call.1} parent=1 // pred_check_branch
      %57 = sbr.rel (0) target = $region21
    $region20: #{tpu_custom_call.1} parent=1 // pred_region
      %s59 = ssub.s32 256, 256
      %60 = vsyncadd [#allocation9], %s59
      %s62 = sshll.u32 [#allocation10], 4
      %s63 = int_to_ptr.vmem [resolvable:$true] %s62
      %65 = dma.hbm_to_vmem [thread:$0]  %s4, 256, %s63, [#allocation9]
    $region21: #{tpu_custom_call.1} parent=1 // pred_fallthru
      _
    // Predicated region
    $region22: #{tpu_custom_call.1} parent=1 // pred_check
      _
    $region23: #{tpu_custom_call.1} parent=1 // pred_check_branch
      %67 = sbr.rel (0) target = $region25
    $region24: #{tpu_custom_call.1} parent=1 // pred_region
      %68 = dma.done [#allocation3], 2048
    $region25: #{tpu_custom_call.1} parent=1 // pred_fallthru
      _
    // Predicated region
    $region26: #{tpu_custom_call.1} parent=1 // pred_check
      _
    $region27: #{tpu_custom_call.1} parent=1 // pred_check_branch
      %70 = sbr.rel (0) target = $region29
    $region28: #{tpu_custom_call.1} parent=1 // pred_region
      %71 = dma.done [#allocation6], 256
    $region29: #{tpu_custom_call.1} parent=1 // pred_fallthru
      _
    // Predicated region
    $region30: #{tpu_custom_call.1} parent=1 // pred_check
      _
    $region31: #{tpu_custom_call.1} parent=1 // pred_check_branch
      %73 = sbr.rel (0) target = $region33
    $region32: #{tpu_custom_call.1} parent=1 // pred_region
      %74 = dma.done [#allocation6], 256
    $region33: #{tpu_custom_call.1} parent=1 // pred_fallthru
      _
    // Predicated region
    $region34: #{tpu_custom_call.1} parent=1 // pred_check
      _
    $region35: #{tpu_custom_call.1} parent=1 // pred_check_branch
      %76 = sbr.rel (0) target = $region37
    $region36: #{tpu_custom_call.1} parent=1 // pred_region
      %77 = dma.done [#allocation9], 256
    $region37: #{tpu_custom_call.1} parent=1 // pred_fallthru
      _
    // Predicated region
    $region38: #{tpu_custom_call.1} parent=1 // pred_check
      _
    $region39: #{tpu_custom_call.1} parent=1 // pred_check_branch
      %79 = sbr.rel (0) target = $region41
    $region40: #{tpu_custom_call.1} parent=1 // pred_region
      %80 = dma.done [#allocation9], 256
    $region41: #{tpu_custom_call.1} parent=1 // pred_fallthru
      _
    %v82 = vld [vmem:[#allocation5] sm:$0xff]
    %v83 = vld [vmem:[#allocation5 + $0x8] sm:$0xff]
    %v84 = vld [vmem:[#allocation2] sm:$0xf]
    %v85 = vld [vmem:[#allocation2 + $0x4] sm:$0xf]
    %v86 = vld [vmem:[#allocation2 + $0x8] sm:$0xf]
    %v87 = vld [vmem:[#allocation2 + $0xc] sm:$0xf]
    %v88 = vld [vmem:[#allocation2 + $0x10] sm:$0xf]
    %v89 = vld [vmem:[#allocation2 + $0x14] sm:$0xf]
    %v90 = vld [vmem:[#allocation2 + $0x18] sm:$0xf]
    %v91 = vld [vmem:[#allocation2 + $0x1c] sm:$0xf]
    %v92 = vld [vmem:[#allocation2 + $0x20] sm:$0xf]
    %v93 = vld [vmem:[#allocation2 + $0x24] sm:$0xf]
    %v94 = vld [vmem:[#allocation2 + $0x28] sm:$0xf]
    %v95 = vld [vmem:[#allocation2 + $0x2c] sm:$0xf]
    %v96 = vld [vmem:[#allocation2 + $0x30] sm:$0xf]
    %v97 = vld [vmem:[#allocation2 + $0x34] sm:$0xf]
    %v98 = vld [vmem:[#allocation2 + $0x38] sm:$0xf]
    %v99 = vld [vmem:[#allocation2 + $0x3c] sm:$0xf]
    %v100 = vld [vmem:[#allocation2 + $0x40] sm:$0xf]
    %v101 = vld [vmem:[#allocation2 + $0x44] sm:$0xf]
    %v102 = vld [vmem:[#allocation2 + $0x48] sm:$0xf]
    %v103 = vld [vmem:[#allocation2 + $0x4c] sm:$0xf]
    %v104 = vld [vmem:[#allocation2 + $0x50] sm:$0xf]
    %v105 = vld [vmem:[#allocation2 + $0x54] sm:$0xf]
    %v106 = vld [vmem:[#allocation2 + $0x58] sm:$0xf]
    %v107 = vld [vmem:[#allocation2 + $0x5c] sm:$0xf]
    %v108 = vld [vmem:[#allocation2 + $0x60] sm:$0xf]
    %v109 = vld [vmem:[#allocation2 + $0x64] sm:$0xf]
    %v110 = vld [vmem:[#allocation2 + $0x68] sm:$0xf]
    %v111 = vld [vmem:[#allocation2 + $0x6c] sm:$0xf]
    %v112 = vld [vmem:[#allocation2 + $0x70] sm:$0xf]
    %v113 = vld [vmem:[#allocation2 + $0x74] sm:$0xf]
    %v114 = vld [vmem:[#allocation2 + $0x78] sm:$0xf]
    %v115 = vld [vmem:[#allocation2 + $0x7c] sm:$0xf]
    %v116 = vld [vmem:[#allocation7] sm:$0xff]
    %v117 = vld [vmem:[#allocation7 + $0x8] sm:$0xff]
    %v118 = vsub.f32 %v82, %v116
    %v119 = vsub.f32 %v83, %v117
    %v120 = vmul.f32 %v118, %v118
    %v121 = vmul.f32 %v119, %v119
    %v122 = vpack.c.bf16 %v118, %v118
    %v123 = vpack.c.bf16 %v119, %v119
    %v156 = vunpack.c.l.b16 %v84
    %v157 = vunpack.c.l.b16 %v85
    %v158 = vunpack.c.l.b16 %v86
    %v159 = vunpack.c.l.b16 %v87
    %v160 = vunpack.c.l.b16 %v88
    %v161 = vunpack.c.l.b16 %v89
    %v162 = vunpack.c.l.b16 %v90
    %v163 = vunpack.c.l.b16 %v91
    %v164 = vunpack.c.l.b16 %v92
    %v165 = vunpack.c.l.b16 %v93
    %v166 = vunpack.c.l.b16 %v94
    %v167 = vunpack.c.l.b16 %v95
    %v168 = vunpack.c.l.b16 %v96
    %v169 = vunpack.c.l.b16 %v97
    %v170 = vunpack.c.l.b16 %v98
    %v171 = vunpack.c.l.b16 %v99
    %v172 = vunpack.c.l.b16 %v100
    %v173 = vunpack.c.l.b16 %v101
    %v174 = vunpack.c.l.b16 %v102
    %v175 = vunpack.c.l.b16 %v103
    %v176 = vunpack.c.l.b16 %v104
    %v177 = vunpack.c.l.b16 %v105
    %v178 = vunpack.c.l.b16 %v106
    %v179 = vunpack.c.l.b16 %v107
    %v180 = vunpack.c.l.b16 %v108
    %v181 = vunpack.c.l.b16 %v109
    %v182 = vunpack.c.l.b16 %v110
    %v183 = vunpack.c.l.b16 %v111
    %v184 = vunpack.c.l.b16 %v112
    %v185 = vunpack.c.l.b16 %v113
    %v186 = vunpack.c.l.b16 %v114
    %v187 = vunpack.c.l.b16 %v115
    %v188 = vpack.c.b16 %v157, %v156
    %v189 = vpack.c.b16 %v159, %v158
    %v190 = vpack.c.b16 %v161, %v160
    %v191 = vpack.c.b16 %v163, %v162
    %v192 = vpack.c.b16 %v165, %v164
    %v193 = vpack.c.b16 %v167, %v166
    %v194 = vpack.c.b16 %v169, %v168
    %v195 = vpack.c.b16 %v171, %v170
    %v196 = vpack.c.b16 %v173, %v172
    %v197 = vpack.c.b16 %v175, %v174
    %v198 = vpack.c.b16 %v177, %v176
    %v199 = vpack.c.b16 %v179, %v178
    %v200 = vpack.c.b16 %v181, %v180
    %v201 = vpack.c.b16 %v183, %v182
    %v202 = vpack.c.b16 %v185, %v184
    %v203 = vpack.c.b16 %v187, %v186
    %220 = vmatprep.subr.bf16.mxu0 0
    %221 = vmatpush1.bf16.msra.mxu0 %v188
    %222 = vmatprep.subr.bf16.mxu0 0
    %223 = vmatpush1.bf16.msra.mxu0 %v189
    %224 = vmatprep.subr.bf16.mxu0 0
    %225 = vmatpush1.bf16.msra.mxu0 %v190
    %226 = vmatprep.subr.bf16.mxu0 0
    %227 = vmatpush1.bf16.msra.mxu0 %v191
    %228 = vmatprep.subr.bf16.mxu0 0
    %229 = vmatpush1.bf16.msra.mxu0 %v192
    %230 = vmatprep.subr.bf16.mxu0 0
    %231 = vmatpush1.bf16.msra.mxu0 %v193
    %232 = vmatprep.subr.bf16.mxu0 0
    %233 = vmatpush1.bf16.msra.mxu0 %v194
    %234 = vmatprep.subr.bf16.mxu0 0
    %235 = vmatpush1.bf16.msra.mxu0 %v195
    %236 = vmatprep.subr.bf16.mxu0 0
    %237 = vmatpush1.bf16.msra.mxu0 %v196
    %238 = vmatprep.subr.bf16.mxu0 0
    %239 = vmatpush1.bf16.msra.mxu0 %v197
    %240 = vmatprep.subr.bf16.mxu0 0
    %241 = vmatpush1.bf16.msra.mxu0 %v198
    %242 = vmatprep.subr.bf16.mxu0 0
    %243 = vmatpush1.bf16.msra.mxu0 %v199
    %244 = vmatprep.subr.bf16.mxu0 0
    %245 = vmatpush1.bf16.msra.mxu0 %v200
    %246 = vmatprep.subr.bf16.mxu0 0
    %247 = vmatpush1.bf16.msra.mxu0 %v201
    %248 = vmatprep.subr.bf16.mxu0 0
    %249 = vmatpush1.bf16.msra.mxu0 %v202
    %250 = vmatprep.subr.bf16.mxu0 0
    %251 = vmatpush1.bf16.msra.mxu0 %v203
    %252 = vmatprep.mubr.bf16.mxu0 %v123
    %253 = vmatmul.mubr.bf16.gmra.mrb[0].mxu0 %v122
    %v254 = vpop.f32.mrb[0].mxu0
    %v255 = vadd.f32 0.0, %v254
    %v256 = vpop.f32.mrb[0].mxu0
    %v257 = vpop.f32.mrb[0].mxu0
    %v258 = vpop.f32.mrb[0].mxu0
    %259 = vdwg.mxu0
    %v260 = vmul.f32 %v255, %v255
    %v261 = vld [vmem:[#allocation8] sm:$0xff]
    %v262 = vld [vmem:[#allocation8 + $0x8] sm:$0xff]
    %v263 = vsub.f32 %v82, %v261
    %v264 = vsub.f32 %v83, %v262
    %v265 = vmul.f32 %v263, %v263
    %v266 = vmul.f32 %v264, %v264
    %v267 = vadd.f32 %v120, %v265
    %v268 = vadd.f32 %v121, %v266
    %v269 = vpack.c.bf16 %v263, %v263
    %v270 = vpack.c.bf16 %v264, %v264
    %271 = vmatprep.subr.bf16.mxu0 0
    %272 = vmatpush1.bf16.msra.mxu0 %v188
    %273 = vmatprep.subr.bf16.mxu0 0
    %274 = vmatpush1.bf16.msra.mxu0 %v189
    %275 = vmatprep.subr.bf16.mxu0 0
    %276 = vmatpush1.bf16.msra.mxu0 %v190
    %277 = vmatprep.subr.bf16.mxu0 0
    %278 = vmatpush1.bf16.msra.mxu0 %v191
    %279 = vmatprep.subr.bf16.mxu0 0
    %280 = vmatpush1.bf16.msra.mxu0 %v192
    %281 = vmatprep.subr.bf16.mxu0 0
    %282 = vmatpush1.bf16.msra.mxu0 %v193
    %283 = vmatprep.subr.bf16.mxu0 0
    %284 = vmatpush1.bf16.msra.mxu0 %v194
    %285 = vmatprep.subr.bf16.mxu0 0
    %286 = vmatpush1.bf16.msra.mxu0 %v195
    %287 = vmatprep.subr.bf16.mxu0 0
    %288 = vmatpush1.bf16.msra.mxu0 %v196
    %289 = vmatprep.subr.bf16.mxu0 0
    %290 = vmatpush1.bf16.msra.mxu0 %v197
    %291 = vmatprep.subr.bf16.mxu0 0
    %292 = vmatpush1.bf16.msra.mxu0 %v198
    %293 = vmatprep.subr.bf16.mxu0 0
    %294 = vmatpush1.bf16.msra.mxu0 %v199
    %295 = vmatprep.subr.bf16.mxu0 0
    %296 = vmatpush1.bf16.msra.mxu0 %v200
    %297 = vmatprep.subr.bf16.mxu0 0
    %298 = vmatpush1.bf16.msra.mxu0 %v201
    %299 = vmatprep.subr.bf16.mxu0 0
    %300 = vmatpush1.bf16.msra.mxu0 %v202
    %301 = vmatprep.subr.bf16.mxu0 0
    %302 = vmatpush1.bf16.msra.mxu0 %v203
    %303 = vmatprep.mubr.bf16.mxu0 %v270
    %304 = vmatmul.mubr.bf16.gmra.mrb[0].mxu0 %v269
    %v305 = vpop.f32.mrb[0].mxu0
    %v306 = vadd.f32 0.0, %v305
    %v307 = vpop.f32.mrb[0].mxu0
    %v308 = vpop.f32.mrb[0].mxu0
    %v309 = vpop.f32.mrb[0].mxu0
    %310 = vdwg.mxu0
    %v311 = vmul.f32 %v306, %v306
    %v312 = vadd.f32 %v260, %v311
    %v313 = vld [vmem:[#allocation10] sm:$0xff]
    %v314 = vld [vmem:[#allocation10 + $0x8] sm:$0xff]
    %v315 = vsub.f32 %v82, %v313
    %v316 = vsub.f32 %v83, %v314
    %v317 = vmul.f32 %v315, %v315
    %v318 = vmul.f32 %v316, %v316
    %v319 = vadd.f32 %v267, %v317
    %v320 = vadd.f32 %v268, %v318
    %v321 = vpack.c.bf16 %v315, %v315
    %v322 = vpack.c.bf16 %v316, %v316
    %323 = vmatprep.subr.bf16.mxu0 0
    %324 = vmatpush1.bf16.msra.mxu0 %v188
    %325 = vmatprep.subr.bf16.mxu0 0
    %326 = vmatpush1.bf16.msra.mxu0 %v189
    %327 = vmatprep.subr.bf16.mxu0 0
    %328 = vmatpush1.bf16.msra.mxu0 %v190
    %329 = vmatprep.subr.bf16.mxu0 0
    %330 = vmatpush1.bf16.msra.mxu0 %v191
    %331 = vmatprep.subr.bf16.mxu0 0
    %332 = vmatpush1.bf16.msra.mxu0 %v192
    %333 = vmatprep.subr.bf16.mxu0 0
    %334 = vmatpush1.bf16.msra.mxu0 %v193
    %335 = vmatprep.subr.bf16.mxu0 0
    %336 = vmatpush1.bf16.msra.mxu0 %v194
    %337 = vmatprep.subr.bf16.mxu0 0
    %338 = vmatpush1.bf16.msra.mxu0 %v195
    %339 = vmatprep.subr.bf16.mxu0 0
    %340 = vmatpush1.bf16.msra.mxu0 %v196
    %341 = vmatprep.subr.bf16.mxu0 0
    %342 = vmatpush1.bf16.msra.mxu0 %v197
    %343 = vmatprep.subr.bf16.mxu0 0
    %344 = vmatpush1.bf16.msra.mxu0 %v198
    %345 = vmatprep.subr.bf16.mxu0 0
    %346 = vmatpush1.bf16.msra.mxu0 %v199
    %347 = vmatprep.subr.bf16.mxu0 0
    %348 = vmatpush1.bf16.msra.mxu0 %v200
    %349 = vmatprep.subr.bf16.mxu0 0
    %350 = vmatpush1.bf16.msra.mxu0 %v201
    %351 = vmatprep.subr.bf16.mxu0 0
    %352 = vmatpush1.bf16.msra.mxu0 %v202
    %353 = vmatprep.subr.bf16.mxu0 0
    %354 = vmatpush1.bf16.msra.mxu0 %v203
    %355 = vmatprep.mubr.bf16.mxu0 %v322
    %356 = vmatmul.mubr.bf16.gmra.mrb[0].mxu0 %v321
    %v357 = vpop.f32.mrb[0].mxu0
    %v358 = vadd.f32 0.0, %v357
    %v359 = vpop.f32.mrb[0].mxu0
    %v360 = vpop.f32.mrb[0].mxu0
    %v361 = vpop.f32.mrb[0].mxu0
    %362 = vdwg.mxu0
    %v363 = vmul.f32 %v358, %v358
    %v364 = vadd.f32 %v312, %v363
    %v365 = vadd.f32 %v319, %v320
    %366 = vadd.xlane.f32.xlu0 %v365
    %v367 = vpop.xlane.xlu0 %366
    %v368 = vrot.slane %v367, 4
    %v369 = vadd.f32 %v367, %v368
    %v370 = vrot.slane %v369, 2
    %v371 = vadd.f32 %v369, %v370
    %v372 = vrot.slane %v371, 1
    %v373 = vadd.f32 %v371, %v372
    %s374 = vtos %v373
    %s375 = smul.f32 %s374, 8.477105e-08
    %v376 = vstv %s375
    %v377 = vadd.f32 %v376, 0.0
    %v378 = vrot.slane %v364, 4
    %v379 = vadd.f32 %v364, %v378
    %v380 = vrot.slane %v379, 2
    %v381 = vadd.f32 %v379, %v380
    %v382 = vrot.slane %v381, 1
    %v383 = vadd.f32 %v381, %v382
    %v384 = vmul.f32 %v383, 0.125
    %v385 = vadd.f32 %v377, %v384
    %386 = vst [vmem:[#allocation11] sm:$0xff] %v385
    // Predicated region
    $region42: #{tpu_custom_call.1} parent=1 // pred_check
      _
    $region43: #{tpu_custom_call.1} parent=1 // pred_check_branch
      %388 = sbr.rel (0) target = $region45
    $region44: #{tpu_custom_call.1} parent=1 // pred_region
      %s390 = ssub.s32 128, 128
      %391 = vsyncadd [#allocation4], %s390
      %s393 = sshll.u32 [#allocation11], 4
      %s394 = int_to_ptr.vmem [resolvable:$true] %s393
      %396 = dma.vmem_to_hbm [thread:$0]  %s394, 128, %s5, [#allocation4]
    $region45: #{tpu_custom_call.1} parent=1 // pred_fallthru
      _
    // Predicated region
    $region46: #{tpu_custom_call.1} parent=1 // pred_check
      _
    $region47: #{tpu_custom_call.1} parent=1 // pred_check_branch
      %398 = sbr.rel (0) target = $region49
    $region48: #{tpu_custom_call.1} parent=1 // pred_region
      %399 = dma.done [#allocation4], 128
    $region49: #{tpu_custom_call.1} parent=1 // pred_fallthru
      _
    %400 = vsyncpa [#allocation3], 1
    %401 = vsyncpa [#allocation6], 1
    %402 = vsyncpa [#allocation9], 1
    %403 = vsyncpa [#allocation4], 1

</llo_original>
